<compile_context>
chip_gen: v5e
topology: v5e:2x2
jax: 0.10.0
libtpu: 0.0.40
codegen_flags: <defaults>
</compile_context>

<pallas_src>
import functools

import jax
import jax.numpy as jnp
from jax.experimental import pallas as pl
from jax.experimental.pallas import tpu as pltpu

_LANES = 128


def _round_up(x, m):
    return ((x + m - 1) // m) * m


def _vmem_budget():
    """Per-generation (vmem_limit_bytes, x_block_budget_bytes)."""
    cap = 128 * 1024 * 1024
    try:
        info = pltpu.get_tpu_info()
        cap = int(getattr(info, "vmem_capacity_bytes", cap)) or cap
    except Exception:
        pass
    # Leave headroom under physical capacity: two double-buffered x blocks plus the
    # small f32 logits/loss temps must fit.  ~48 MiB limit / ~10 MiB block on v7x
    # (64 MiB VMEM); ~96 MiB limit / ~21 MiB block on v5e/v6e (128 MiB VMEM).
    vmem_limit = min((cap * 3) // 4, 96 * 1024 * 1024)
    x_block_budget = cap // 6
    return vmem_limit, x_block_budget


def _pick_tile_n(n, d, itemsize, x_block_budget_bytes):
    """Rows per block sized by bytes, not a fixed row cap."""
    rows = (x_block_budget_bytes // max(1, d * itemsize)) // _LANES * _LANES
    rows = max(_LANES, rows)
    # Keep >= 4 grid blocks when N is large enough so the "parallel" axis shards
    # across v7x's two TensorCores and the DMA pipeline stays busy.
    rows = min(rows, max(_LANES, _round_up(pl.cdiv(n, 4), _LANES)))
    return rows


def _decode_kernel(x_ref, w_ref, b_ref, y_ref, logits_ref, loss_ref, *, n_valid):
    # x_ref:      (TILE_N, D)       VMEM, native dtype, streamed over N
    # w_ref:      (8, D)            VMEM, fc.weight in row 0, zero rows 1..7 (resident)
    # b_ref:      (1, 1)            SMEM, fc.bias (f32)
    # y_ref:      (1, TILE_N)       VMEM, lane-dense target block (f32)
    # logits_ref: (1, TILE_N)       VMEM out, lane-dense logits block (f32)
    # loss_ref:   (1, 1, 128)       VMEM out, per-block BCE partial sum (broadcast)
    i = pl.program_id(0)
    tile_n = x_ref.shape[0]
    b = b_ref[0, 0]

    # Linear(D, 1): contract D in the activation's NATIVE dtype (bf16 feeds the MXU
    # directly with f32 accumulation); the result is born lane-dense (block rows on
    # the 128-lane axis).  Rows 1..7 of w are zero padding for sublane alignment.
    z8 = jnp.einsum("od,nd->on", w_ref[...], x_ref[...],
                    preferred_element_type=jnp.float32)          # (8, TILE_N) f32
    z = z8[0:1, :] + b                                           # (1, TILE_N) f32
    logits_ref[...] = z

    # BCEWithLogitsLoss (numerically stable): max(z,0) - z*y + log1p(exp(-|z|))
    y = y_ref[...]
    per = jnp.maximum(z, 0.0) - z * y + jnp.log1p(jnp.exp(-jnp.abs(z)))

    # Mask rows beyond the true N (ragged last block / alignment pad) BEFORE the
    # reduction; the mean divides by the true N in the wrapper.
    lane = jax.lax.broadcasted_iota(jnp.int32, (1, tile_n), 1)
    per = jnp.where(i * tile_n + lane < n_valid, per, 0.0)
    loss_ref[...] = jnp.full(loss_ref.shape, jnp.sum(per), dtype=jnp.float32)


def decode_layer_forward(probe, weight, bias, target, dropout_p=0.1,
                         training=False, tile_n=None):
    """probe: (1, N, D); weight: (1, D); bias: (1,); target: (N,).

    Returns (loss, inp, target) matching the PyTorch module in eval mode.
    """
    if training and dropout_p > 0.0:
        # TODO(synk): training-mode dropout (pltpu.prng_seed / prng_random_bits) not implemented.
        raise NotImplementedError("DecodeLayer Pallas kernel implements eval-mode dropout only")

    x = jnp.squeeze(probe, axis=0)                       # (N, D), native dtype
    n, d = x.shape
    itemsize = jnp.dtype(x.dtype).itemsize

    vmem_limit, x_block_budget = _vmem_budget()

    # Cheap sublane-alignment pad (<= 7 rows).  The big activation is NOT padded to
    # a tile multiple; the ragged last block is masked in-kernel.
    n8 = _round_up(n, 8)
    if n8 != n:
        x = jnp.pad(x, ((0, n8 - n), (0, 0)))

    if tile_n is None:
        tile_n = _pick_tile_n(n, d, itemsize, x_block_budget)
    else:
        tile_n = max(_LANES, _round_up(tile_n, _LANES))
    tile_n = min(tile_n, n8)                             # tiny inputs: one exact block
    num_blocks = pl.cdiv(n8, tile_n)
    n_pad = num_blocks * tile_n

    # Lane-dense target row; padding this 1-D f32 vector is negligible traffic.
    y = target.astype(jnp.float32).reshape(1, n)
    if n_pad != n:
        y = jnp.pad(y, ((0, 0), (0, n_pad - n)))

    # fc.weight zero-padded to 8 sublanes, in the activation's dtype (MXU-native feed).
    w8 = (jnp.zeros((8, d), dtype=x.dtype)
          .at[0, :].set(weight.reshape(d).astype(x.dtype)))
    b = bias.reshape(1, 1).astype(jnp.float32)

    kernel = functools.partial(_decode_kernel, n_valid=n)

    logits_row, loss_blocks = pl.pallas_call(
        kernel,
        grid=(num_blocks,),
        in_specs=[
            pl.BlockSpec((tile_n, d), lambda i: (i, 0)),                 # x: streamed over N
            pl.BlockSpec((8, d), lambda i: (0, 0)),                      # weight: resident
            pl.BlockSpec((1, 1), lambda i: (0, 0),
                         memory_space=pltpu.MemorySpace.SMEM),           # bias scalar
            pl.BlockSpec((1, tile_n), lambda i: (0, i)),                 # target (lane-dense)
        ],
        out_specs=(
            pl.BlockSpec((1, tile_n), lambda i: (0, i)),                 # logits (lane-dense)
            pl.BlockSpec((1, 1, _LANES), lambda i: (i, 0, 0)),           # loss partial sums
        ),
        out_shape=(
            jax.ShapeDtypeStruct((1, n_pad), jnp.float32),
            jax.ShapeDtypeStruct((num_blocks, 1, _LANES), jnp.float32),
        ),
        compiler_params=pltpu.CompilerParams(
            dimension_semantics=("parallel",),   # no carried state -> rows split over TCs
            vmem_limit_bytes=vmem_limit,
        ),
    )(x, w8, b, y)

    inp = logits_row.reshape(n_pad, 1)[:n]               # (N, 1) logits, f32
    loss = jnp.sum(loss_blocks[:, 0, 0]) / jnp.float32(n)
    return loss, inp, target


def _reference(probe, weight, bias, target):
    x = jnp.squeeze(probe, axis=0).astype(jnp.float32)
    # Match the kernel's precision choice: the weight is fed to the MXU in the
    # activation's native dtype with f32 accumulation.
    w = weight.astype(probe.dtype).astype(jnp.float32)
    z = x @ w.T + bias.astype(jnp.float32)               # (N, 1)
    y = target.astype(jnp.float32)[:, None]
    per = jnp.maximum(z, 0.0) - z * y + jnp.log1p(jnp.exp(-jnp.abs(z)))
    return jnp.mean(per), z


if __name__ == "__main__":
    key = jax.random.PRNGKey(0)
    k_probe, k_w, k_t, k_probe2, k_t2 = jax.random.split(key, 5)

    # Case 1: small f32 shapes consistent with the module.
    n1, d1 = 8, 32
    probe = jax.random.normal(k_probe, (1, n1, d1), dtype=jnp.float32)
    # reset_parameters: weight ~ Normal(std=0.02), bias = 0
    weight = 0.02 * jax.random.normal(k_w, (1, d1), dtype=jnp.float32)
    bias = jnp.zeros((1,), dtype=jnp.float32)
    target = jax.random.bernoulli(k_t, 0.5, (n1,)).astype(jnp.int32)

    loss, inp, tgt = decode_layer_forward(probe, weight, bias, target)
    jax.block_until_ready((loss, inp, tgt))
    ref_loss, ref_logits = _reference(probe, weight, bias, target)
    assert inp.shape == (n1, 1)
    assert jnp.allclose(inp, ref_logits, atol=1e-5), "case1 logits mismatch"
    assert jnp.allclose(loss, ref_loss, atol=1e-5), "case1 loss mismatch"

    # Case 2: bf16 activations, N not a multiple of the tile, multiple grid blocks
    # (exercises native-dtype MXU feed, unpadded ragged last block, parallel N axis).
    n2, d2 = 300, 64
    probe2 = jax.random.normal(k_probe2, (1, n2, d2), jnp.float32).astype(jnp.bfloat16)
    weight2 = 0.02 * jax.random.normal(k_w, (1, d2), dtype=jnp.float32)
    target2 = jax.random.bernoulli(k_t2, 0.5, (n2,)).astype(jnp.int32)

    loss2, inp2, _ = decode_layer_forward(probe2, weight2, bias, target2, tile_n=128)
    jax.block_until_ready((loss2, inp2))
    ref_loss2, ref_logits2 = _reference(probe2, weight2, bias, target2)
    assert inp2.shape == (n2, 1)
    assert jnp.allclose(inp2, ref_logits2, atol=2e-4), "case2 logits mismatch"
    assert jnp.allclose(loss2, ref_loss2, atol=1e-4), "case2 loss mismatch"

    print("KERNEL_OK")
</pallas_src>

<mosaic_0001>
module attributes {stable_mosaic.version = 11 : i64} {
  func.func @_decode_kernel(%arg0: i32, %arg1: memref<8x32xf32, #tpu.memory_space<vmem>>, %arg2: memref<8x32xf32, #tpu.memory_space<vmem>>, %arg3: memref<1x1xf32, #tpu.memory_space<smem>>, %arg4: memref<1x8xf32, #tpu.memory_space<vmem>>, %arg5: memref<1x8xf32, #tpu.memory_space<vmem>>, %arg6: memref<1x1x128xf32, #tpu.memory_space<vmem>>) attributes {dimension_semantics = [#tpu.dimension_semantics<parallel>], iteration_bounds = array<i64: 1>, scalar_prefetch = 0 : i64, scratch_operands = 0 : i64, tpu.core_type = #tpu.core_type<tc>, window_params = [{transform_indices = @transform_0, window_bounds = array<i64: 8, 32>}, {pipeline_mode = #tpu.pipeline_mode<synchronous>, transform_indices = @transform_1, window_bounds = array<i64: 8, 32>}, {transform_indices = @transform_2, window_bounds = array<i64: 1, 1>}, {transform_indices = @transform_3, window_bounds = array<i64: 1, 8>}, {transform_indices = @transform_4, window_bounds = array<i64: 1, 8>}, {transform_indices = @transform_5, window_bounds = array<i64: 1, 1, 128>}]} {
    %c0 = arith.constant 0 : index
    %c0_0 = arith.constant 0 : index
    %0 = memref.load %arg3[%c0, %c0_0] : memref<1x1xf32, #tpu.memory_space<smem>>
    %c0_1 = arith.constant 0 : index
    %c0_2 = arith.constant 0 : index
    %1 = vector.load %arg2[%c0_1, %c0_2] : memref<8x32xf32, #tpu.memory_space<vmem>>, vector<8x32xf32>
    %c0_3 = arith.constant 0 : index
    %c0_4 = arith.constant 0 : index
    %2 = vector.load %arg1[%c0_3, %c0_4] : memref<8x32xf32, #tpu.memory_space<vmem>>, vector<8x32xf32>
    "tpu.trace_start"() <{level = 10 : i32, message = "od,nd->on"}> : () -> ()
    %cst = arith.constant dense<0.000000e+00> : vector<8x8xf32>
    %3 = tpu.matmul %1, %2, %cst {dimension_numbers = #tpu.dot_dimension_numbers<[1], [1], [0], [0], [0, 0, 1, 0], [], []>} : vector<8x32xf32>, vector<8x32xf32>, vector<8x8xf32> -> vector<8x8xf32>
    "tpu.trace_stop"() : () -> ()
    %4 = vector.extract_strided_slice %3 {offsets = [0, 0], sizes = [1, 8], strides = [1, 1]} : vector<8x8xf32> to vector<1x8xf32>
    %5 = vector.broadcast %0 : f32 to vector<1x8xf32>
    %6 = arith.addf %4, %5 : vector<1x8xf32>
    %c0_5 = arith.constant 0 : index
    %c0_6 = arith.constant 0 : index
    %7 = vector.load %arg5[%c0_5, %c0_6] : memref<1x8xf32, #tpu.memory_space<vmem>>, vector<1x8xf32>
    tpu.vector_store %arg5[%c0_5, %c0_6], %6 {strides = array<i32>} : memref<1x8xf32, #tpu.memory_space<vmem>>, vector<1x8xf32>,
    %c0_7 = arith.constant 0 : index
    %c0_8 = arith.constant 0 : index
    %8 = vector.load %arg4[%c0_7, %c0_8] : memref<1x8xf32, #tpu.memory_space<vmem>>, vector<1x8xf32>
    %cst_9 = arith.constant 0.000000e+00 : f32
    %9 = vector.broadcast %cst_9 : f32 to vector<1x8xf32>
    %10 = arith.maximumf %6, %9 : vector<1x8xf32>
    %11 = arith.mulf %6, %8 : vector<1x8xf32>
    %12 = arith.subf %10, %11 : vector<1x8xf32>
    %13 = math.absf %6 : vector<1x8xf32>
    %cst_10 = arith.constant 0.000000e+00 : f32
    %14 = vector.broadcast %cst_10 : f32 to vector<1x8xf32>
    %15 = arith.subf %14, %13 : vector<1x8xf32>
    %16 = math.exp %15 : vector<1x8xf32>
    %17 = math.log1p %16 : vector<1x8xf32>
    %18 = arith.addf %12, %17 : vector<1x8xf32>
    %19 = tpu.iota {dimensions = array<i32: 1>} : vector<1x8xi32>
    %c8_i32 = arith.constant 8 : i32
    %20 = arith.muli %arg0, %c8_i32 : i32
    %21 = vector.broadcast %20 : i32 to vector<1x8xi32>
    %22 = arith.addi %21, %19 : vector<1x8xi32>
    %c8_i32_11 = arith.constant 8 : i32
    %23 = vector.broadcast %c8_i32_11 : i32 to vector<1x8xi32>
    %24 = arith.cmpi slt, %22, %23 : vector<1x8xi32>
    %cst_12 = arith.constant 0.000000e+00 : f32
    %25 = vector.broadcast %cst_12 : f32 to vector<1x8xf32>
    %26 = arith.select %24, %18, %25 : vector<1x8xi1>, vector<1x8xf32>
    %27 = vector.shape_cast %26 : vector<1x8xf32> to vector<1x1x8xf32>
    %cst_13 = arith.constant dense<0.000000e+00> : vector<1xf32>
    %28 = vector.multi_reduction <add>, %27, %cst_13 [1, 2] : vector<1x1x8xf32> to vector<1xf32>
    %29 = vector.shape_cast %28 : vector<1xf32> to vector<1x1x1xf32>
    %30 = vector.extract %29[0, 0, 0] : f32 from vector<1x1x1xf32>
    %31 = vector.broadcast %30 : f32 to vector<1x1x128xf32>
    %c0_14 = arith.constant 0 : index
    %c0_15 = arith.constant 0 : index
    %c0_16 = arith.constant 0 : index
    %32 = vector.load %arg6[%c0_14, %c0_15, %c0_16] : memref<1x1x128xf32, #tpu.memory_space<vmem>>, vector<1x1x128xf32>
    tpu.vector_store %arg6[%c0_14, %c0_15, %c0_16], %31 {strides = array<i32>} : memref<1x1x128xf32, #tpu.memory_space<vmem>>, vector<1x1x128xf32>,
    return
  }
  func.func @transform_0(%arg0: i32) -> (i32, i32) {
    %c0_i32 = arith.constant 0 : i32
    %c0_i32_0 = arith.constant 0 : i32
    return %arg0, %c0_i32 : i32, i32
  }
  func.func @transform_1(%arg0: i32) -> (i32, i32) {
    %c0_i32 = arith.constant 0 : i32
    %c0_i32_0 = arith.constant 0 : i32
    %c0_i32_1 = arith.constant 0 : i32
    return %c0_i32, %c0_i32_0 : i32, i32
  }
  func.func @transform_2(%arg0: i32) -> (i32, i32) {
    %c0_i32 = arith.constant 0 : i32
    %c0_i32_0 = arith.constant 0 : i32
    %c0_i32_1 = arith.constant 0 : i32
    return %c0_i32, %c0_i32_0 : i32, i32
  }
  func.func @transform_3(%arg0: i32) -> (i32, i32) {
    %c0_i32 = arith.constant 0 : i32
    %c0_i32_0 = arith.constant 0 : i32
    return %c0_i32, %arg0 : i32, i32
  }
  func.func @transform_4(%arg0: i32) -> (i32, i32) {
    %c0_i32 = arith.constant 0 : i32
    %c0_i32_0 = arith.constant 0 : i32
    return %c0_i32, %arg0 : i32, i32
  }
  func.func @transform_5(%arg0: i32) -> (i32, i32, i32) {
    %c0_i32 = arith.constant 0 : i32
    %c0_i32_0 = arith.constant 0 : i32
    %c0_i32_1 = arith.constant 0 : i32
    return %arg0, %c0_i32, %c0_i32_0 : i32, i32, i32
  }
}

</mosaic_0001>

<llo_original>
// kernel: tpu_custom_call.1
$region0: #{tpu_custom_call.1}
  #allocation0 [shape = 'u32[]', space=smem, size = 0x4, offset = 0x4, fixed_abs, tag = 'smem constant byte address 0x4 - core index']
  #allocation1 [shape = 'u32[72,128]{1,0:T(1,128)}', space=vmem, size = 0x9000, scoped, tag = 'internal scratch']
  #allocation2 [shape = 'f32[1,1]{1,0:T(1,128)S(6)}', space=smem, size = 0x200, scoped, tag = 'scoped memory for tpu_custom_call.1']
  %s0 = inlined_call_operand.hbm [shape: f32[8,32], index: 0, kind: input, shape index: {}]
  %s1 = inlined_call_operand.hbm [shape: f32[8,32], index: 1, kind: input, shape index: {}]
  %s2 = inlined_call_operand.<no memory space> [shape: f32[1,1], index: 2, kind: input, shape index: {}]
  %s3 = inlined_call_operand.vmem [shape: f32[1,8], index: 3, kind: input, shape index: {}]
  %s4 = inlined_call_operand.hbm [shape: f32[1,8], index: 4, kind: output, shape index: {0}]
  %s5 = inlined_call_operand.hbm [shape: f32[1,1,128], index: 5, kind: output, shape index: {1}]
  %6 = xla_tuple %s4, %s5
  %s7 = sld [smem:[#allocation0]]
  $region42: #{tpu_custom_call.1} parent=0
    _
  %s9 = ssub.s32 1, %s7
  %s10 = scalar_select 0, %s9, %s7
  %11 = sst [smem:[#allocation2]] %s2
  $region1: #{tpu_custom_call.1} parent=0
    #allocation3 [shape = 'u8[4096]{0}', space=vmem, size = 0x1000, scoped, tag = 'input window, operand 0, single buffered']
    #allocation4 [shape = 's32[1]{0}', space=sflag, size = 0x4, scoped, tag = 'scoped memory for tpu_custom_call.1']
    #allocation5 [shape = 's32[1]{0}', space=sflag, size = 0x4, scoped, tag = 'scoped memory for tpu_custom_call.1']
    #allocation6 [shape = 'u8[4096]{0}', space=vmem, size = 0x1000, scoped, tag = 'input window, operand 1, single buffered']
    #allocation7 [shape = 's32[1]{0}', space=sflag, size = 0x4, scoped, tag = 'scoped memory for tpu_custom_call.1']
    #allocation8 [shape = 'u8[512]{0}', space=vmem, size = 0x400, scoped, tag = 'output window, operand 0, single buffered']
    #allocation9 [shape = 'u8[512]{0}', space=vmem, size = 0x400, scoped, tag = 'output window, operand 1, single buffered']
    #allocation10 [shape = 's32[1]{0}', space=sflag, size = 0x4, scoped, tag = 'scoped memory for tpu_custom_call.1']
    %12 = vsyncpa [#allocation4], 0
    %13 = vsyncpa [#allocation7], 0
    %14 = vsyncpa [#allocation5], 0
    %15 = vsyncpa [#allocation10], 0
    // Predicated region
    $region2: #{tpu_custom_call.1} parent=1 // pred_check
      _
    $region3: #{tpu_custom_call.1} parent=1 // pred_check_branch
      %17 = sbr.rel (0) target = $region5
    $region4: #{tpu_custom_call.1} parent=1 // pred_region
      %19 = vsyncadd [#allocation4], 0
      %s21 = sshll.u32 %s0, 4
      %s22 = int_to_ptr.hbm [resolvable:$true] %s21
      %s23 = sshll.u32 [#allocation3], 4
      %s24 = int_to_ptr.vmem [resolvable:$true] %s23
      %26 = dma.hbm_to_vmem [thread:$0]  %s22, 128, %s24, [#allocation4]
    $region5: #{tpu_custom_call.1} parent=1 // pred_fallthru
      _
    // Predicated region
    $region6: #{tpu_custom_call.1} parent=1 // pred_check
      _
    $region7: #{tpu_custom_call.1} parent=1 // pred_check_branch
      %28 = sbr.rel (0) target = $region9
    $region8: #{tpu_custom_call.1} parent=1 // pred_region
      %30 = vsyncadd [#allocation7], 0
      %s32 = sshll.u32 %s1, 4
      %s33 = int_to_ptr.hbm [resolvable:$true] %s32
      %s34 = sshll.u32 [#allocation6], 4
      %s35 = int_to_ptr.vmem [resolvable:$true] %s34
      %37 = dma.hbm_to_vmem [thread:$0]  %s33, 128, %s35, [#allocation7]
    $region9: #{tpu_custom_call.1} parent=1 // pred_fallthru
      _
    // Predicated region
    $region10: #{tpu_custom_call.1} parent=1 // pred_check
      _
    $region11: #{tpu_custom_call.1} parent=1 // pred_check_branch
      %39 = sbr.rel (0) target = $region13
    $region12: #{tpu_custom_call.1} parent=1 // pred_region
      _
    $region13: #{tpu_custom_call.1} parent=1 // pred_fallthru
      _
    // Predicated region
    $region14: #{tpu_custom_call.1} parent=1 // pred_check
      _
    $region15: #{tpu_custom_call.1} parent=1 // pred_check_branch
      %41 = sbr.rel (0) target = $region17
    $region16: #{tpu_custom_call.1} parent=1 // pred_region
      _
    $region17: #{tpu_custom_call.1} parent=1 // pred_fallthru
      _
    // Predicated region
    $region18: #{tpu_custom_call.1} parent=1 // pred_check
      _
    $region19: #{tpu_custom_call.1} parent=1 // pred_check_branch
      %43 = sbr.rel (0) target = $region21
    $region20: #{tpu_custom_call.1} parent=1 // pred_region
      %45 = dma.done [#allocation4], 128
    $region21: #{tpu_custom_call.1} parent=1 // pred_fallthru
      _
    // Predicated region
    $region22: #{tpu_custom_call.1} parent=1 // pred_check
      _
    $region23: #{tpu_custom_call.1} parent=1 // pred_check_branch
      %47 = sbr.rel (0) target = $region25
    $region24: #{tpu_custom_call.1} parent=1 // pred_region
      %49 = dma.done [#allocation7], 128
    $region25: #{tpu_custom_call.1} parent=1 // pred_fallthru
      _
    %s50 = sld [smem:[#allocation2]]
    %v51 = vld [vmem:[#allocation6] sm:$0xff]
    %v52 = vld [vmem:[#allocation3] sm:$0xff]
    %vm53 = vcmask 261120
    %v55 = vsel %vm53, %v51, 0
    %v58 = vsel %vm53, %v52, 0
    %60 = vmatpush.xpose.msra.mxu0 0.0
    %61 = vmatpush.xpose.msra.mxu0 0.0
    %62 = vmatpush.xpose.msra.mxu0 0.0
    %63 = vmatpush.xpose.msra.mxu0 0.0
    %64 = vmatpush.xpose.msra.mxu0 0.0
    %65 = vmatpush.xpose.msra.mxu0 0.0
    %66 = vmatpush.xpose.msra.mxu0 0.0
    %67 = vmatpush.xpose.msra.mxu0 0.0
    %68 = vmatpush.xpose.msra.mxu0 0.0
    %69 = vmatpush.xpose.msra.mxu0 0.0
    %70 = vmatpush.xpose.msra.mxu0 0.0
    %71 = vmatpush.xpose.msra.mxu0 0.0
    %72 = vmatpush.xpose.msra.mxu0 0.0
    %73 = vmatpush.xpose.msra.mxu0 0.0
    %74 = vmatpush.xpose.msra.mxu0 0.0
    %75 = vmatpush.xpose.msra.mxu0 %v58
    %76 = vmatmul.f32.gmra.mxu0 %v55
    %v77 = vpop.f32.mrf.mxu0
    %v78 = vadd.f32 0.0, %v77
    %79 = vdwg.mxu0
    %v80 = vstv %s50
    %v81 = vadd.f32 %v78, %v80
    %vm82 = vcmask 57344
    %83 = vst.msk [vmem:[#allocation8] sm:$0x1] %vm82, %v81
    %v84 = vld [vmem:[%s3] sm:$0x1]
    %v85 = vmax.f32 %v81, 0.0
    %v86 = vmul.f32 %v81, %v84
    %v87 = vsub.f32 %v85, %v86
    %v88 = vand.u32 2147483647, %v81
    %v89 = vsub.f32 0.0, %v88
    %v90 = vmul.f32 %v89, 1.442695
    %v91 = vpow.pop %v90
    %v92 = vadd.f32 %v91, 1.0
    %v93 = vlog2.pop %v92
    %v94 = vmul.f32 %v93, 0.6931472
    %v95 = vmul.f32 -0.5, %v91
    %v96 = vadd.f32 %v95, 1.0
    %v97 = vmul.f32 %v96, %v91
    %v98 = vand.u32 2147483647, %v91
    %vm99 = vcmp.lt.f32.partialorder %v98, 0.0004427343
    %v100 = vsel %vm99, %v97, %v94
    %v101 = vadd.f32 %v87, %v100
    %v102 = vlaneseq
    %v103 = vand.u32 %v102, 127
    %s104 = smul.u32 0, 8
    %v105 = vstv %s104
    %v106 = vadd.s32 %v105, %v103
    %vm107 = vcmp.lt.s32.totalorder %v106, 8
    %v108 = vsel %vm107, %v101, 0.0
    %v109 = vsel %vm82, %v108, 0.0
    %110 = vadd.xlane.f32.xlu0 %v109
    %v111 = vpop.xlane.xlu0 %110
    %v112 = vrot.slane %v111, 4
    %v113 = vadd.f32 %v111, %v112
    %v114 = vrot.slane %v113, 2
    %v115 = vadd.f32 %v113, %v114
    %v116 = vrot.slane %v115, 1
    %v117 = vadd.f32 %v115, %v116
    %s118 = vtos %v117
    %v119 = vstv %s118
    %120 = vst [vmem:[#allocation9] sm:$0x1] %v119
    // Predicated region
    $region26: #{tpu_custom_call.1} parent=1 // pred_check
      _
    $region27: #{tpu_custom_call.1} parent=1 // pred_check_branch
      %122 = sbr.rel (0) target = $region29
    $region28: #{tpu_custom_call.1} parent=1 // pred_region
      %124 = vsyncadd [#allocation5], 0
      %s126 = sshll.u32 [#allocation8], 4
      %s127 = int_to_ptr.vmem [resolvable:$true] %s126
      %s128 = sshll.u32 %s4, 4
      %s129 = int_to_ptr.hbm [resolvable:$true] %s128
      %131 = dma.vmem_to_hbm [thread:$0]  %s127, 16, %s129, [#allocation5]
    $region29: #{tpu_custom_call.1} parent=1 // pred_fallthru
      _
    // Predicated region
    $region30: #{tpu_custom_call.1} parent=1 // pred_check
      _
    $region31: #{tpu_custom_call.1} parent=1 // pred_check_branch
      %133 = sbr.rel (0) target = $region33
    $region32: #{tpu_custom_call.1} parent=1 // pred_region
      %135 = vsyncadd [#allocation10], 0
      %s137 = sshll.u32 [#allocation9], 4
      %s138 = int_to_ptr.vmem [resolvable:$true] %s137
      %s139 = sshll.u32 %s5, 4
      %s140 = int_to_ptr.hbm [resolvable:$true] %s139
      %142 = dma.vmem_to_hbm [thread:$0]  %s138, 16, %s140, [#allocation10]
    $region33: #{tpu_custom_call.1} parent=1 // pred_fallthru
      _
    // Predicated region
    $region34: #{tpu_custom_call.1} parent=1 // pred_check
      _
    $region35: #{tpu_custom_call.1} parent=1 // pred_check_branch
      %144 = sbr.rel (0) target = $region37
    $region36: #{tpu_custom_call.1} parent=1 // pred_region
      %146 = dma.done [#allocation5], 16
    $region37: #{tpu_custom_call.1} parent=1 // pred_fallthru
      _
    // Predicated region
    $region38: #{tpu_custom_call.1} parent=1 // pred_check
      _
    $region39: #{tpu_custom_call.1} parent=1 // pred_check_branch
      %148 = sbr.rel (0) target = $region41
    $region40: #{tpu_custom_call.1} parent=1 // pred_region
      %150 = dma.done [#allocation10], 16
    $region41: #{tpu_custom_call.1} parent=1 // pred_fallthru
      _
    %151 = vsyncpa [#allocation4], 1
    %152 = vsyncpa [#allocation7], 1
    %153 = vsyncpa [#allocation5], 1
    %154 = vsyncpa [#allocation10], 1

</llo_original>
